<compile_context>
chip_gen: v5e
topology: v5e:2x2
jax: 0.10.0
libtpu: 0.0.40
codegen_flags: <defaults>
</compile_context>

<pallas_src>
import jax
import jax.numpy as jnp
from jax.experimental import pallas as pl
from jax.experimental.pallas import tpu as pltpu


def stl_kernel(x_ref, wqk_ref, seg_ref, v_ref, o_ref):
    # x_ref:   [Nblk, P*d_q]      packed queries (P batch rows per lane-row)
    # wqk_ref: [P*d_q, P*H*T]     kron(eye(P), Wq_scaled @ Kt_blk)  (score projection)
    # seg_ref: [P*H*T, P*H*T]     block-diagonal ones (per-head segmented row-sum)
    # v_ref:   [P*H*T, P*E]       kron(eye(P), V_blk)
    # o_ref:   [Nblk, P*E]
    s = jnp.dot(x_ref[...], wqk_ref[...], preferred_element_type=jnp.float32)

    # Numerically-stable softmax: one shared max per packed row is a valid shift for
    # every (batch-row, head) segment; stability handled by the denom clamp below.
    m = jnp.max(s, axis=-1, keepdims=True)
    p = jnp.exp(s - m)

    # Segmented (per-head) row sums via block-diagonal ones matmul: lane-dense, MXU.
    denom = jnp.dot(p, seg_ref[...], preferred_element_type=jnp.float32)
    # Clamp so a fully-underflowed segment gives 0 instead of inf/NaN.
    attn = p * pl.reciprocal(jnp.maximum(denom, 1e-20), approx=True)

    o_ref[...] = jnp.dot(attn, v_ref[...],
                         preferred_element_type=jnp.float32).astype(o_ref.dtype)


def prepare_stl_params(embed, wq_t, wk_t, wv_t, num_heads, *, pack=8):
    """One-time (per parameter update) preprocessing; all batch-independent.

    embed [T, d_k]; wq_t [d_q, E]; wk_t, wv_t [d_k, E] (already [in, out]).
    Returns lane-packed operands:
      wqk_p [pack*d_q, pack*H*T], seg_p [pack*H*T, pack*H*T], v_p [pack*H*T, pack*E].
    """
    t, d_k = embed.shape
    e = wq_t.shape[1]
    assert e % num_heads == 0, (e, num_heads)
    dh = e // num_heads

    keys_in = jnp.tanh(embed)                              # tanh(embed), hoisted
    k = keys_in @ wk_t                                     # [T, E]
    v = keys_in @ wv_t                                     # [T, E]
    wq_scaled = wq_t * (1.0 / (float(d_k) ** 0.5))         # fold score scale into Wq

    # Per-head block-diagonal K^T and V.
    kt_blk = jnp.zeros((e, num_heads * t), jnp.float32)
    v_blk = jnp.zeros((num_heads * t, e), jnp.float32)
    for h in range(num_heads):
        kt_blk = kt_blk.at[h * dh:(h + 1) * dh, h * t:(h + 1) * t].set(
            k[:, h * dh:(h + 1) * dh].T)
        v_blk = v_blk.at[h * t:(h + 1) * t, h * dh:(h + 1) * dh].set(
            v[:, h * dh:(h + 1) * dh])

    # Fold the Q projection into the score matmul (exact by associativity).
    w_qk = wq_scaled @ kt_blk                              # [d_q, H*T]
    # Per-head segmented row-sum matrix.
    seg = jnp.kron(jnp.eye(num_heads, dtype=jnp.float32),
                   jnp.ones((t, t), jnp.float32))          # [H*T, H*T]

    # Lane-pack: replicate block-diagonally for `pack` batch rows per lane-row.
    eye_p = jnp.eye(pack, dtype=jnp.float32)
    wqk_p = jnp.kron(eye_p, w_qk)                          # [P*d_q, P*H*T]
    seg_p = jnp.kron(eye_p, seg)                           # [P*H*T, P*H*T]
    v_p = jnp.kron(eye_p, v_blk)                           # [P*H*T, P*E]
    return wqk_p, seg_p, v_p


def stl_forward(inputs, wqk_p, seg_p, v_p, *, num_units, pack=8, block_rows=512):
    """inputs [N, d_q] + prepared packed params -> [N, 1, E]."""
    n, d_q = inputs.shape
    e = num_units
    pd = pack * d_q
    ht_p = wqk_p.shape[1]          # pack * H * T
    pe = pack * e

    # Pad N to a multiple of `pack` (contiguous, cheap) and pack rows into lanes.
    n_pad = ((n + pack - 1) // pack) * pack
    if n_pad != n:
        inputs = jnp.pad(inputs, ((0, n_pad - n), (0, 0)))
    n_pack = n_pad // pack
    x = inputs.reshape(n_pack, pd)                          # row-major, free reshape

    cost = pl.CostEstimate(
        flops=2 * n_pack * (pd * ht_p + ht_p * ht_p + ht_p * pe),
        transcendentals=2 * n_pack * ht_p,                  # exp + reciprocal
        bytes_accessed=4 * (n_pack * pd + pd * ht_p + ht_p * ht_p
                            + ht_p * pe + n_pack * pe))

    if n_pack <= block_rows:
        # Small batch: single grid point, everything resident in VMEM (tiny shapes).
        out = pl.pallas_call(
            stl_kernel,
            out_shape=jax.ShapeDtypeStruct((n_pack, pe), jnp.float32),
            cost_estimate=cost,
        )(x, wqk_p, seg_p, v_p)
    else:
        # Large batch: 1-D grid over packed rows, batch-parallel (megacore on v7x).
        # NOTE: for best v7x utilization pick block_rows so the grid has >= 2 steps.
        out = pl.pallas_call(
            stl_kernel,
            out_shape=jax.ShapeDtypeStruct((n_pack, pe), jnp.float32),
            grid_spec=pltpu.PrefetchScalarGridSpec(
                num_scalar_prefetch=0,
                grid=(pl.cdiv(n_pack, block_rows),),
                in_specs=[pl.BlockSpec((block_rows, pd), lambda i: (i, 0)),
                          pl.BlockSpec((pd, ht_p), lambda i: (0, 0)),
                          pl.BlockSpec((ht_p, ht_p), lambda i: (0, 0)),
                          pl.BlockSpec((ht_p, pe), lambda i: (0, 0))],
                out_specs=pl.BlockSpec((block_rows, pe), lambda i: (i, 0)),
            ),
            compiler_params=pltpu.CompilerParams(
                dimension_semantics=("parallel",)),
            cost_estimate=cost,
        )(x, wqk_p, seg_p, v_p)

    out = out.reshape(n_pad, e)[:n]                         # unpack lanes -> rows
    return out.reshape(n, 1, e)


def stl_ref(inputs, embed, wq, wk, wv, num_heads):
    """Pure-JAX reference matching the PyTorch forward (takes raw parameters)."""
    keys_in = jnp.tanh(embed)
    q = inputs @ wq
    k = keys_in @ wk
    v = keys_in @ wv
    d_k = embed.shape[1]
    dh = q.shape[1] // num_heads
    outs = []
    for h in range(num_heads):
        s = (q[:, h * dh:(h + 1) * dh] @ k[:, h * dh:(h + 1) * dh].T) / (d_k ** 0.5)
        p = jax.nn.softmax(s, axis=-1)
        outs.append(p @ v[:, h * dh:(h + 1) * dh])
    return jnp.concatenate(outs, axis=-1).reshape(inputs.shape[0], 1, -1)


if __name__ == "__main__":
    # hparams: token_num=8, E=32, num_heads=4  (small, consistent with the module)
    token_num, E, num_heads = 8, 32, 4
    d_q = E // 2                # query_dim
    d_k = E // num_heads        # key_dim == embed feature dim
    PACK = 8                    # batch rows packed into lanes (P*d_q = 128 lanes)

    key = jax.random.PRNGKey(0)
    k_in, k_emb, k_q, k_k, k_v, k_big = jax.random.split(key, 6)

    # init.normal_(embed, mean=0, std=0.5)
    embed = 0.5 * jax.random.normal(k_emb, (token_num, d_k), dtype=jnp.float32)
    # nn.Linear weights are [out, in]; store transposed as [in, out] for the kernel.
    wq = (jax.random.normal(k_q, (E, d_q), dtype=jnp.float32) / jnp.sqrt(d_q)).T
    wk = (jax.random.normal(k_k, (E, d_k), dtype=jnp.float32) / jnp.sqrt(d_k)).T
    wv = (jax.random.normal(k_v, (E, d_k), dtype=jnp.float32) / jnp.sqrt(d_k)).T

    # One-time, batch-independent parameter prep (cached across forward calls).
    wqk_p, seg_p, v_p = prepare_stl_params(embed, wq, wk, wv, num_heads, pack=PACK)

    # Small batch (N=2, padded to one packed row) -> single-grid-point path.
    N = 2
    inputs = jax.random.normal(k_in, (N, d_q), dtype=jnp.float32)
    out = jax.block_until_ready(
        stl_forward(inputs, wqk_p, seg_p, v_p, num_units=E, pack=PACK))
    ref = stl_ref(inputs, embed, wq, wk, wv, num_heads)
    assert out.shape == (N, 1, E), out.shape
    assert jnp.allclose(out, ref, atol=2e-3, rtol=2e-3), float(jnp.max(jnp.abs(out - ref)))

    # Larger batch, still one grid point (128 packed rows <= block_rows).
    N2 = 1024
    inputs2 = jax.random.normal(k_big, (N2, d_q), dtype=jnp.float32)
    out2 = jax.block_until_ready(
        stl_forward(inputs2, wqk_p, seg_p, v_p, num_units=E, pack=PACK))
    ref2 = stl_ref(inputs2, embed, wq, wk, wv, num_heads)
    assert out2.shape == (N2, 1, E), out2.shape
    assert jnp.allclose(out2, ref2, atol=2e-3, rtol=2e-3), float(jnp.max(jnp.abs(out2 - ref2)))

    # Exercise the gridded, batch-parallel path (grid of 4 blocks of 32 packed rows).
    out3 = jax.block_until_ready(
        stl_forward(inputs2, wqk_p, seg_p, v_p, num_units=E, pack=PACK, block_rows=32))
    assert jnp.allclose(out3, ref2, atol=2e-3, rtol=2e-3), float(jnp.max(jnp.abs(out3 - ref2)))

    print("KERNEL_OK")
</pallas_src>

<mosaic_0001>
module attributes {stable_mosaic.version = 11 : i64} {
  func.func @stl_kernel(%arg0: memref<1x128xf32, #tpu.memory_space<vmem>>, %arg1: memref<128x256xf32, #tpu.memory_space<vmem>>, %arg2: memref<256x256xf32, #tpu.memory_space<vmem>>, %arg3: memref<256x256xf32, #tpu.memory_space<vmem>>, %arg4: memref<1x256xf32, #tpu.memory_space<vmem>>) attributes {dimension_semantics = [], scalar_prefetch = 0 : i64, scratch_operands = 0 : i64, tpu.core_type = #tpu.core_type<tc>} {
    %c0 = arith.constant 0 : index
    %c0_0 = arith.constant 0 : index
    %0 = vector.load %arg0[%c0, %c0_0] : memref<1x128xf32, #tpu.memory_space<vmem>>, vector<1x128xf32>
    %c0_1 = arith.constant 0 : index
    %c0_2 = arith.constant 0 : index
    %1 = vector.load %arg1[%c0_1, %c0_2] : memref<128x256xf32, #tpu.memory_space<vmem>>, vector<128x256xf32>
    %cst = arith.constant dense<0.000000e+00> : vector<1x256xf32>
    %2 = tpu.matmul %0, %1, %cst {dimension_numbers = #tpu.dot_dimension_numbers<[1], [0], [0], [1], [0, 0, 1, 1], [], []>} : vector<1x128xf32>, vector<128x256xf32>, vector<1x256xf32> -> vector<1x256xf32>
    %cst_3 = arith.constant dense<0xFF800000> : vector<1xf32>
    %3 = vector.multi_reduction <maximumf>, %2, %cst_3 [1] : vector<1x256xf32> to vector<1xf32>
    %4 = vector.shape_cast %3 : vector<1xf32> to vector<1x1xf32>
    %5 = vector.broadcast %4 : vector<1x1xf32> to vector<1x256xf32>
    %6 = arith.subf %2, %5 : vector<1x256xf32>
    %7 = math.exp %6 : vector<1x256xf32>
    %c0_4 = arith.constant 0 : index
    %c0_5 = arith.constant 0 : index
    %8 = vector.load %arg2[%c0_4, %c0_5] : memref<256x256xf32, #tpu.memory_space<vmem>>, vector<256x256xf32>
    %cst_6 = arith.constant dense<0.000000e+00> : vector<1x256xf32>
    %9 = tpu.matmul %7, %8, %cst_6 {dimension_numbers = #tpu.dot_dimension_numbers<[1], [0], [0], [1], [0, 0, 1, 1], [], []>} : vector<1x256xf32>, vector<256x256xf32>, vector<1x256xf32> -> vector<1x256xf32>
    %cst_7 = arith.constant 9.99999968E-21 : f32
    %10 = vector.broadcast %cst_7 : f32 to vector<1x256xf32>
    %11 = arith.maximumf %9, %10 : vector<1x256xf32>
    %12 = tpu.reciprocal %11 {approx = true} : vector<1x256xf32> -> vector<1x256xf32>
    %13 = arith.mulf %7, %12 : vector<1x256xf32>
    %c0_8 = arith.constant 0 : index
    %c0_9 = arith.constant 0 : index
    %14 = vector.load %arg3[%c0_8, %c0_9] : memref<256x256xf32, #tpu.memory_space<vmem>>, vector<256x256xf32>
    %cst_10 = arith.constant dense<0.000000e+00> : vector<1x256xf32>
    %15 = tpu.matmul %13, %14, %cst_10 {dimension_numbers = #tpu.dot_dimension_numbers<[1], [0], [0], [1], [0, 0, 1, 1], [], []>} : vector<1x256xf32>, vector<256x256xf32>, vector<1x256xf32> -> vector<1x256xf32>
    %c0_11 = arith.constant 0 : index
    %c0_12 = arith.constant 0 : index
    %16 = vector.load %arg4[%c0_11, %c0_12] : memref<1x256xf32, #tpu.memory_space<vmem>>, vector<1x256xf32>
    tpu.vector_store %arg4[%c0_11, %c0_12], %15 {strides = array<i32>} : memref<1x256xf32, #tpu.memory_space<vmem>>, vector<1x256xf32>,
    return
  }
}

</mosaic_0001>

<llo_original>
// kernel: tpu_custom_call.1
$region0: #{tpu_custom_call.1}
  #allocation0 [shape = 'u32[]', space=smem, size = 0x4, offset = 0x4, fixed_abs, tag = 'smem constant byte address 0x4 - core index']
  #allocation1 [shape = 'u32[72,128]{1,0:T(1,128)}', space=vmem, size = 0x9000, scoped, tag = 'internal scratch']
  %s0 = inlined_call_operand.hbm [shape: f32[1,128], index: 0, kind: input, shape index: {}]
  %s1 = inlined_call_operand.hbm [shape: f32[128,256], index: 1, kind: input, shape index: {}]
  %s2 = inlined_call_operand.hbm [shape: f32[256,256], index: 2, kind: input, shape index: {}]
  %s3 = inlined_call_operand.hbm [shape: f32[256,256], index: 3, kind: input, shape index: {}]
  %s4 = inlined_call_operand.hbm [shape: f32[1,256], index: 4, kind: output, shape index: {}]
  %s5 = sld [smem:[#allocation0]]
  $region42: #{tpu_custom_call.1} parent=0
    _
  %s7 = ssub.s32 1, %s5
  %s8 = scalar_select 0, %s7, %s5
  $region1: #{tpu_custom_call.1} parent=0
    #allocation2 [shape = 'u8[512]{0}', space=vmem, size = 0x400, scoped, tag = 'input window, operand 0, single buffered']
    #allocation3 [shape = 's32[1]{0}', space=sflag, size = 0x4, scoped, tag = 'scoped memory for tpu_custom_call.1']
    #allocation4 [shape = 's32[1]{0}', space=sflag, size = 0x4, scoped, tag = 'scoped memory for tpu_custom_call.1']
    #allocation5 [shape = 'u8[131072]{0}', space=vmem, size = 0x20000, scoped, tag = 'input window, operand 1, single buffered']
    #allocation6 [shape = 's32[1]{0}', space=sflag, size = 0x4, scoped, tag = 'scoped memory for tpu_custom_call.1']
    #allocation7 [shape = 'u8[262144]{0}', space=vmem, size = 0x40000, scoped, tag = 'input window, operand 2, single buffered']
    #allocation8 [shape = 'u8[262144]{0}', space=vmem, size = 0x40000, scoped, tag = 'input window, operand 3, single buffered']
    #allocation9 [shape = 's32[1]{0}', space=sflag, size = 0x4, scoped, tag = 'scoped memory for tpu_custom_call.1']
    #allocation10 [shape = 'u8[1024]{0}', space=vmem, size = 0x400, scoped, tag = 'output window, operand 0, single buffered']
    %9 = vsyncpa [#allocation3], 0
    %10 = vsyncpa [#allocation6], 0
    %11 = vsyncpa [#allocation9], 0
    %12 = vsyncpa [#allocation4], 0
    // Predicated region
    $region2: #{tpu_custom_call.1} parent=1 // pred_check
      _
    $region3: #{tpu_custom_call.1} parent=1 // pred_check_branch
      %14 = sbr.rel (0) target = $region5
    $region4: #{tpu_custom_call.1} parent=1 // pred_region
      %16 = vsyncadd [#allocation3], 0
      %s18 = sshll.u32 %s0, 4
      %s19 = int_to_ptr.hbm [resolvable:$true] %s18
      %s20 = sshll.u32 [#allocation2], 4
      %s21 = int_to_ptr.vmem [resolvable:$true] %s20
      %23 = dma.hbm_to_vmem [thread:$0]  %s19, 16, %s21, [#allocation3]
    $region5: #{tpu_custom_call.1} parent=1 // pred_fallthru
      _
    // Predicated region
    $region6: #{tpu_custom_call.1} parent=1 // pred_check
      _
    $region7: #{tpu_custom_call.1} parent=1 // pred_check_branch
      %25 = sbr.rel (0) target = $region9
    $region8: #{tpu_custom_call.1} parent=1 // pred_region
      %27 = vsyncadd [#allocation6], 0
      %s28 = sshll.u32 %s1, 4
      %s29 = int_to_ptr.hbm [resolvable:$true] %s28
      %s30 = sshll.u32 [#allocation5], 4
      %s31 = int_to_ptr.vmem [resolvable:$true] %s30
      %36 = dma.hbm_to_vmem [thread:$0]  %s29, 4096, %s31, [#allocation6], 256, 256, 16
    $region9: #{tpu_custom_call.1} parent=1 // pred_fallthru
      _
    // Predicated region
    $region10: #{tpu_custom_call.1} parent=1 // pred_check
      _
    $region11: #{tpu_custom_call.1} parent=1 // pred_check_branch
      %38 = sbr.rel (0) target = $region13
    $region12: #{tpu_custom_call.1} parent=1 // pred_region
      %40 = vsyncadd [#allocation6], 0
      %s41 = sshll.u32 %s2, 4
      %s42 = int_to_ptr.hbm [resolvable:$true] %s41
      %s43 = sshll.u32 [#allocation7], 4
      %s44 = int_to_ptr.vmem [resolvable:$true] %s43
      %49 = dma.hbm_to_vmem [thread:$0]  %s42, 8192, %s44, [#allocation6], 256, 256, 16
    $region13: #{tpu_custom_call.1} parent=1 // pred_fallthru
      _
    // Predicated region
    $region14: #{tpu_custom_call.1} parent=1 // pred_check
      _
    $region15: #{tpu_custom_call.1} parent=1 // pred_check_branch
      %51 = sbr.rel (0) target = $region17
    $region16: #{tpu_custom_call.1} parent=1 // pred_region
      %53 = vsyncadd [#allocation9], 0
      %s54 = sshll.u32 %s3, 4
      %s55 = int_to_ptr.hbm [resolvable:$true] %s54
      %s56 = sshll.u32 [#allocation8], 4
      %s57 = int_to_ptr.vmem [resolvable:$true] %s56
      %62 = dma.hbm_to_vmem [thread:$0]  %s55, 8192, %s57, [#allocation9], 256, 256, 16
    $region17: #{tpu_custom_call.1} parent=1 // pred_fallthru
      _
    // Predicated region
    $region18: #{tpu_custom_call.1} parent=1 // pred_check
      _
    $region19: #{tpu_custom_call.1} parent=1 // pred_check_branch
      %64 = sbr.rel (0) target = $region21
    $region20: #{tpu_custom_call.1} parent=1 // pred_region
      %66 = dma.done [#allocation3], 16
    $region21: #{tpu_custom_call.1} parent=1 // pred_fallthru
      _
    // Predicated region
    $region22: #{tpu_custom_call.1} parent=1 // pred_check
      _
    $region23: #{tpu_custom_call.1} parent=1 // pred_check_branch
      %68 = sbr.rel (0) target = $region25
    $region24: #{tpu_custom_call.1} parent=1 // pred_region
      %70 = dma.done [#allocation6], 4096
    $region25: #{tpu_custom_call.1} parent=1 // pred_fallthru
      _
    // Predicated region
    $region26: #{tpu_custom_call.1} parent=1 // pred_check
      _
    $region27: #{tpu_custom_call.1} parent=1 // pred_check_branch
      %72 = sbr.rel (0) target = $region29
    $region28: #{tpu_custom_call.1} parent=1 // pred_region
      %74 = dma.done [#allocation6], 8192
    $region29: #{tpu_custom_call.1} parent=1 // pred_fallthru
      _
    // Predicated region
    $region30: #{tpu_custom_call.1} parent=1 // pred_check
      _
    $region31: #{tpu_custom_call.1} parent=1 // pred_check_branch
      %76 = sbr.rel (0) target = $region33
    $region32: #{tpu_custom_call.1} parent=1 // pred_region
      %78 = dma.done [#allocation9], 8192
    $region33: #{tpu_custom_call.1} parent=1 // pred_fallthru
      _
    %v79 = vld [vmem:[#allocation2] sm:$0x1]
    %v80 = vld [vmem:[#allocation5] sm:$0xff]
    %v81 = vld [vmem:[#allocation5 + $0x8] sm:$0xff]
    %v82 = vld [vmem:[#allocation5 + $0x10] sm:$0xff]
    %v83 = vld [vmem:[#allocation5 + $0x18] sm:$0xff]
    %v84 = vld [vmem:[#allocation5 + $0x20] sm:$0xff]
    %v85 = vld [vmem:[#allocation5 + $0x28] sm:$0xff]
    %v86 = vld [vmem:[#allocation5 + $0x30] sm:$0xff]
    %v87 = vld [vmem:[#allocation5 + $0x38] sm:$0xff]
    %v88 = vld [vmem:[#allocation5 + $0x40] sm:$0xff]
    %v89 = vld [vmem:[#allocation5 + $0x48] sm:$0xff]
    %v90 = vld [vmem:[#allocation5 + $0x50] sm:$0xff]
    %v91 = vld [vmem:[#allocation5 + $0x58] sm:$0xff]
    %v92 = vld [vmem:[#allocation5 + $0x60] sm:$0xff]
    %v93 = vld [vmem:[#allocation5 + $0x68] sm:$0xff]
    %v94 = vld [vmem:[#allocation5 + $0x70] sm:$0xff]
    %v95 = vld [vmem:[#allocation5 + $0x78] sm:$0xff]
    %v96 = vld [vmem:[#allocation5 + $0x80] sm:$0xff]
    %v97 = vld [vmem:[#allocation5 + $0x88] sm:$0xff]
    %v98 = vld [vmem:[#allocation5 + $0x90] sm:$0xff]
    %v99 = vld [vmem:[#allocation5 + $0x98] sm:$0xff]
    %v100 = vld [vmem:[#allocation5 + $0xa0] sm:$0xff]
    %v101 = vld [vmem:[#allocation5 + $0xa8] sm:$0xff]
    %v102 = vld [vmem:[#allocation5 + $0xb0] sm:$0xff]
    %v103 = vld [vmem:[#allocation5 + $0xb8] sm:$0xff]
    %v104 = vld [vmem:[#allocation5 + $0xc0] sm:$0xff]
    %v105 = vld [vmem:[#allocation5 + $0xc8] sm:$0xff]
    %v106 = vld [vmem:[#allocation5 + $0xd0] sm:$0xff]
    %v107 = vld [vmem:[#allocation5 + $0xd8] sm:$0xff]
    %v108 = vld [vmem:[#allocation5 + $0xe0] sm:$0xff]
    %v109 = vld [vmem:[#allocation5 + $0xe8] sm:$0xff]
    %v110 = vld [vmem:[#allocation5 + $0xf0] sm:$0xff]
    %v111 = vld [vmem:[#allocation5 + $0xf8] sm:$0xff]
    %112 = vmatpush.msra.mxu0 %v110
    %113 = vmatpush.msra.mxu0 %v108
    %114 = vmatpush.msra.mxu0 %v106
    %115 = vmatpush.msra.mxu0 %v104
    %116 = vmatpush.msra.mxu0 %v102
    %117 = vmatpush.msra.mxu0 %v100
    %118 = vmatpush.msra.mxu0 %v98
    %119 = vmatpush.msra.mxu0 %v96
    %120 = vmatpush.msra.mxu0 %v94
    %121 = vmatpush.msra.mxu0 %v92
    %122 = vmatpush.msra.mxu0 %v90
    %123 = vmatpush.msra.mxu0 %v88
    %124 = vmatpush.msra.mxu0 %v86
    %125 = vmatpush.msra.mxu0 %v84
    %126 = vmatpush.msra.mxu0 %v82
    %127 = vmatpush.msra.mxu0 %v80
    %128 = vmatmul.f32.gmra.mxu0 %v79
    %v129 = vpop.f32.mrf.mxu0
    %v130 = vadd.f32 0.0, %v129
    %131 = vdwg.mxu0
    %132 = vmatpush.msra.mxu0 %v111
    %133 = vmatpush.msra.mxu0 %v109
    %134 = vmatpush.msra.mxu0 %v107
    %135 = vmatpush.msra.mxu0 %v105
    %136 = vmatpush.msra.mxu0 %v103
    %137 = vmatpush.msra.mxu0 %v101
    %138 = vmatpush.msra.mxu0 %v99
    %139 = vmatpush.msra.mxu0 %v97
    %140 = vmatpush.msra.mxu0 %v95
    %141 = vmatpush.msra.mxu0 %v93
    %142 = vmatpush.msra.mxu0 %v91
    %143 = vmatpush.msra.mxu0 %v89
    %144 = vmatpush.msra.mxu0 %v87
    %145 = vmatpush.msra.mxu0 %v85
    %146 = vmatpush.msra.mxu0 %v83
    %147 = vmatpush.msra.mxu0 %v81
    %148 = vmatmul.f32.gmra.mxu0 %v79
    %v149 = vpop.f32.mrf.mxu0
    %v150 = vadd.f32 0.0, %v149
    %151 = vdwg.mxu0
    %vm152 = vcmask 1040384
    %v153 = vsel %vm152, %v130, -inf
    %v154 = vsel %vm152, %v150, -inf
    %v155 = vmax.f32 %v153, %v154
    %156 = vmax.xlane.f32.xlu0 %v155
    %v157 = vpop.xlane.xlu0 %156
    %v158 = vsub.f32 %v130, %v157
    %v159 = vsub.f32 %v150, %v157
    %v160 = vmul.f32 %v158, 1.442695
    %v161 = vpow.pop %v160
    %v162 = vmul.f32 %v159, 1.442695
    %v163 = vpow.pop %v162
    %v164 = vld [vmem:[#allocation7] sm:$0xff]
    %v165 = vld [vmem:[#allocation7 + $0x8] sm:$0xff]
    %v166 = vld [vmem:[#allocation7 + $0x10] sm:$0xff]
    %v167 = vld [vmem:[#allocation7 + $0x18] sm:$0xff]
    %v168 = vld [vmem:[#allocation7 + $0x20] sm:$0xff]
    %v169 = vld [vmem:[#allocation7 + $0x28] sm:$0xff]
    %v170 = vld [vmem:[#allocation7 + $0x30] sm:$0xff]
    %v171 = vld [vmem:[#allocation7 + $0x38] sm:$0xff]
    %v172 = vld [vmem:[#allocation7 + $0x40] sm:$0xff]
    %v173 = vld [vmem:[#allocation7 + $0x48] sm:$0xff]
    %v174 = vld [vmem:[#allocation7 + $0x50] sm:$0xff]
    %v175 = vld [vmem:[#allocation7 + $0x58] sm:$0xff]
    %v176 = vld [vmem:[#allocation7 + $0x60] sm:$0xff]
    %v177 = vld [vmem:[#allocation7 + $0x68] sm:$0xff]
    %v178 = vld [vmem:[#allocation7 + $0x70] sm:$0xff]
    %v179 = vld [vmem:[#allocation7 + $0x78] sm:$0xff]
    %v180 = vld [vmem:[#allocation7 + $0x80] sm:$0xff]
    %v181 = vld [vmem:[#allocation7 + $0x88] sm:$0xff]
    %v182 = vld [vmem:[#allocation7 + $0x90] sm:$0xff]
    %v183 = vld [vmem:[#allocation7 + $0x98] sm:$0xff]
    %v184 = vld [vmem:[#allocation7 + $0xa0] sm:$0xff]
    %v185 = vld [vmem:[#allocation7 + $0xa8] sm:$0xff]
    %v186 = vld [vmem:[#allocation7 + $0xb0] sm:$0xff]
    %v187 = vld [vmem:[#allocation7 + $0xb8] sm:$0xff]
    %v188 = vld [vmem:[#allocation7 + $0xc0] sm:$0xff]
    %v189 = vld [vmem:[#allocation7 + $0xc8] sm:$0xff]
    %v190 = vld [vmem:[#allocation7 + $0xd0] sm:$0xff]
    %v191 = vld [vmem:[#allocation7 + $0xd8] sm:$0xff]
    %v192 = vld [vmem:[#allocation7 + $0xe0] sm:$0xff]
    %v193 = vld [vmem:[#allocation7 + $0xe8] sm:$0xff]
    %v194 = vld [vmem:[#allocation7 + $0xf0] sm:$0xff]
    %v195 = vld [vmem:[#allocation7 + $0xf8] sm:$0xff]
    %v196 = vld [vmem:[#allocation7 + $0x100] sm:$0xff]
    %v197 = vld [vmem:[#allocation7 + $0x108] sm:$0xff]
    %v198 = vld [vmem:[#allocation7 + $0x110] sm:$0xff]
    %v199 = vld [vmem:[#allocation7 + $0x118] sm:$0xff]
    %v200 = vld [vmem:[#allocation7 + $0x120] sm:$0xff]
    %v201 = vld [vmem:[#allocation7 + $0x128] sm:$0xff]
    %v202 = vld [vmem:[#allocation7 + $0x130] sm:$0xff]
    %v203 = vld [vmem:[#allocation7 + $0x138] sm:$0xff]
    %v204 = vld [vmem:[#allocation7 + $0x140] sm:$0xff]
    %v205 = vld [vmem:[#allocation7 + $0x148] sm:$0xff]
    %v206 = vld [vmem:[#allocation7 + $0x150] sm:$0xff]
    %v207 = vld [vmem:[#allocation7 + $0x158] sm:$0xff]
    %v208 = vld [vmem:[#allocation7 + $0x160] sm:$0xff]
    %v209 = vld [vmem:[#allocation7 + $0x168] sm:$0xff]
    %v210 = vld [vmem:[#allocation7 + $0x170] sm:$0xff]
    %v211 = vld [vmem:[#allocation7 + $0x178] sm:$0xff]
    %v212 = vld [vmem:[#allocation7 + $0x180] sm:$0xff]
    %v213 = vld [vmem:[#allocation7 + $0x188] sm:$0xff]
    %v214 = vld [vmem:[#allocation7 + $0x190] sm:$0xff]
    %v215 = vld [vmem:[#allocation7 + $0x198] sm:$0xff]
    %v216 = vld [vmem:[#allocation7 + $0x1a0] sm:$0xff]
    %v217 = vld [vmem:[#allocation7 + $0x1a8] sm:$0xff]
    %v218 = vld [vmem:[#allocation7 + $0x1b0] sm:$0xff]
    %v219 = vld [vmem:[#allocation7 + $0x1b8] sm:$0xff]
    %v220 = vld [vmem:[#allocation7 + $0x1c0] sm:$0xff]
    %v221 = vld [vmem:[#allocation7 + $0x1c8] sm:$0xff]
    %v222 = vld [vmem:[#allocation7 + $0x1d0] sm:$0xff]
    %v223 = vld [vmem:[#allocation7 + $0x1d8] sm:$0xff]
    %v224 = vld [vmem:[#allocation7 + $0x1e0] sm:$0xff]
    %v225 = vld [vmem:[#allocation7 + $0x1e8] sm:$0xff]
    %v226 = vld [vmem:[#allocation7 + $0x1f0] sm:$0xff]
    %v227 = vld [vmem:[#allocation7 + $0x1f8] sm:$0xff]
    %228 = vmatpush.msra.mxu0 %v194
    %229 = vmatpush.msra.mxu0 %v192
    %230 = vmatpush.msra.mxu0 %v190
    %231 = vmatpush.msra.mxu0 %v188
    %232 = vmatpush.msra.mxu0 %v186
    %233 = vmatpush.msra.mxu0 %v184
    %234 = vmatpush.msra.mxu0 %v182
    %235 = vmatpush.msra.mxu0 %v180
    %236 = vmatpush.msra.mxu0 %v178
    %237 = vmatpush.msra.mxu0 %v176
    %238 = vmatpush.msra.mxu0 %v174
    %239 = vmatpush.msra.mxu0 %v172
    %240 = vmatpush.msra.mxu0 %v170
    %241 = vmatpush.msra.mxu0 %v168
    %242 = vmatpush.msra.mxu0 %v166
    %243 = vmatpush.msra.mxu0 %v164
    %244 = vmatmul.f32.gmra.mxu0 %v161
    %v245 = vpop.f32.mrf.mxu0
    %v246 = vadd.f32 0.0, %v245
    %247 = vdwg.mxu0
    %248 = vmatpush.msra.mxu0 %v226
    %249 = vmatpush.msra.mxu0 %v224
    %250 = vmatpush.msra.mxu0 %v222
    %251 = vmatpush.msra.mxu0 %v220
    %252 = vmatpush.msra.mxu0 %v218
    %253 = vmatpush.msra.mxu0 %v216
    %254 = vmatpush.msra.mxu0 %v214
    %255 = vmatpush.msra.mxu0 %v212
    %256 = vmatpush.msra.mxu0 %v210
    %257 = vmatpush.msra.mxu0 %v208
    %258 = vmatpush.msra.mxu0 %v206
    %259 = vmatpush.msra.mxu0 %v204
    %260 = vmatpush.msra.mxu0 %v202
    %261 = vmatpush.msra.mxu0 %v200
    %262 = vmatpush.msra.mxu0 %v198
    %263 = vmatpush.msra.mxu0 %v196
    %264 = vmatmul.f32.gmra.mxu0 %v163
    %v265 = vpop.f32.mrf.mxu0
    %v266 = vadd.f32 %v246, %v265
    %267 = vdwg.mxu0
    %268 = vmatpush.msra.mxu0 %v195
    %269 = vmatpush.msra.mxu0 %v193
    %270 = vmatpush.msra.mxu0 %v191
    %271 = vmatpush.msra.mxu0 %v189
    %272 = vmatpush.msra.mxu0 %v187
    %273 = vmatpush.msra.mxu0 %v185
    %274 = vmatpush.msra.mxu0 %v183
    %275 = vmatpush.msra.mxu0 %v181
    %276 = vmatpush.msra.mxu0 %v179
    %277 = vmatpush.msra.mxu0 %v177
    %278 = vmatpush.msra.mxu0 %v175
    %279 = vmatpush.msra.mxu0 %v173
    %280 = vmatpush.msra.mxu0 %v171
    %281 = vmatpush.msra.mxu0 %v169
    %282 = vmatpush.msra.mxu0 %v167
    %283 = vmatpush.msra.mxu0 %v165
    %284 = vmatmul.f32.gmra.mxu0 %v161
    %v285 = vpop.f32.mrf.mxu0
    %v286 = vadd.f32 0.0, %v285
    %287 = vdwg.mxu0
    %288 = vmatpush.msra.mxu0 %v227
    %289 = vmatpush.msra.mxu0 %v225
    %290 = vmatpush.msra.mxu0 %v223
    %291 = vmatpush.msra.mxu0 %v221
    %292 = vmatpush.msra.mxu0 %v219
    %293 = vmatpush.msra.mxu0 %v217
    %294 = vmatpush.msra.mxu0 %v215
    %295 = vmatpush.msra.mxu0 %v213
    %296 = vmatpush.msra.mxu0 %v211
    %297 = vmatpush.msra.mxu0 %v209
    %298 = vmatpush.msra.mxu0 %v207
    %299 = vmatpush.msra.mxu0 %v205
    %300 = vmatpush.msra.mxu0 %v203
    %301 = vmatpush.msra.mxu0 %v201
    %302 = vmatpush.msra.mxu0 %v199
    %303 = vmatpush.msra.mxu0 %v197
    %304 = vmatmul.f32.gmra.mxu0 %v163
    %v305 = vpop.f32.mrf.mxu0
    %v306 = vadd.f32 %v286, %v305
    %307 = vdwg.mxu0
    %v308 = vmax.f32 %v266, 1e-20
    %v309 = vmax.f32 %v306, 1e-20
    %v310 = vrcp.pop %v308
    %v311 = vrcp.pop %v309
    %v312 = vmul.f32 %v161, %v310
    %v313 = vmul.f32 %v163, %v311
    %v314 = vld [vmem:[#allocation8] sm:$0xff]
    %v315 = vld [vmem:[#allocation8 + $0x8] sm:$0xff]
    %v316 = vld [vmem:[#allocation8 + $0x10] sm:$0xff]
    %v317 = vld [vmem:[#allocation8 + $0x18] sm:$0xff]
    %v318 = vld [vmem:[#allocation8 + $0x20] sm:$0xff]
    %v319 = vld [vmem:[#allocation8 + $0x28] sm:$0xff]
    %v320 = vld [vmem:[#allocation8 + $0x30] sm:$0xff]
    %v321 = vld [vmem:[#allocation8 + $0x38] sm:$0xff]
    %v322 = vld [vmem:[#allocation8 + $0x40] sm:$0xff]
    %v323 = vld [vmem:[#allocation8 + $0x48] sm:$0xff]
    %v324 = vld [vmem:[#allocation8 + $0x50] sm:$0xff]
    %v325 = vld [vmem:[#allocation8 + $0x58] sm:$0xff]
    %v326 = vld [vmem:[#allocation8 + $0x60] sm:$0xff]
    %v327 = vld [vmem:[#allocation8 + $0x68] sm:$0xff]
    %v328 = vld [vmem:[#allocation8 + $0x70] sm:$0xff]
    %v329 = vld [vmem:[#allocation8 + $0x78] sm:$0xff]
    %v330 = vld [vmem:[#allocation8 + $0x80] sm:$0xff]
    %v331 = vld [vmem:[#allocation8 + $0x88] sm:$0xff]
    %v332 = vld [vmem:[#allocation8 + $0x90] sm:$0xff]
    %v333 = vld [vmem:[#allocation8 + $0x98] sm:$0xff]
    %v334 = vld [vmem:[#allocation8 + $0xa0] sm:$0xff]
    %v335 = vld [vmem:[#allocation8 + $0xa8] sm:$0xff]
    %v336 = vld [vmem:[#allocation8 + $0xb0] sm:$0xff]
    %v337 = vld [vmem:[#allocation8 + $0xb8] sm:$0xff]
    %v338 = vld [vmem:[#allocation8 + $0xc0] sm:$0xff]
    %v339 = vld [vmem:[#allocation8 + $0xc8] sm:$0xff]
    %v340 = vld [vmem:[#allocation8 + $0xd0] sm:$0xff]
    %v341 = vld [vmem:[#allocation8 + $0xd8] sm:$0xff]
    %v342 = vld [vmem:[#allocation8 + $0xe0] sm:$0xff]
    %v343 = vld [vmem:[#allocation8 + $0xe8] sm:$0xff]
    %v344 = vld [vmem:[#allocation8 + $0xf0] sm:$0xff]
    %v345 = vld [vmem:[#allocation8 + $0xf8] sm:$0xff]
    %v346 = vld [vmem:[#allocation8 + $0x100] sm:$0xff]
    %v347 = vld [vmem:[#allocation8 + $0x108] sm:$0xff]
    %v348 = vld [vmem:[#allocation8 + $0x110] sm:$0xff]
    %v349 = vld [vmem:[#allocation8 + $0x118] sm:$0xff]
    %v350 = vld [vmem:[#allocation8 + $0x120] sm:$0xff]
    %v351 = vld [vmem:[#allocation8 + $0x128] sm:$0xff]
    %v352 = vld [vmem:[#allocation8 + $0x130] sm:$0xff]
    %v353 = vld [vmem:[#allocation8 + $0x138] sm:$0xff]
    %v354 = vld [vmem:[#allocation8 + $0x140] sm:$0xff]
    %v355 = vld [vmem:[#allocation8 + $0x148] sm:$0xff]
    %v356 = vld [vmem:[#allocation8 + $0x150] sm:$0xff]
    %v357 = vld [vmem:[#allocation8 + $0x158] sm:$0xff]
    %v358 = vld [vmem:[#allocation8 + $0x160] sm:$0xff]
    %v359 = vld [vmem:[#allocation8 + $0x168] sm:$0xff]
    %v360 = vld [vmem:[#allocation8 + $0x170] sm:$0xff]
    %v361 = vld [vmem:[#allocation8 + $0x178] sm:$0xff]
    %v362 = vld [vmem:[#allocation8 + $0x180] sm:$0xff]
    %v363 = vld [vmem:[#allocation8 + $0x188] sm:$0xff]
    %v364 = vld [vmem:[#allocation8 + $0x190] sm:$0xff]
    %v365 = vld [vmem:[#allocation8 + $0x198] sm:$0xff]
    %v366 = vld [vmem:[#allocation8 + $0x1a0] sm:$0xff]
    %v367 = vld [vmem:[#allocation8 + $0x1a8] sm:$0xff]
    %v368 = vld [vmem:[#allocation8 + $0x1b0] sm:$0xff]
    %v369 = vld [vmem:[#allocation8 + $0x1b8] sm:$0xff]
    %v370 = vld [vmem:[#allocation8 + $0x1c0] sm:$0xff]
    %v371 = vld [vmem:[#allocation8 + $0x1c8] sm:$0xff]
    %v372 = vld [vmem:[#allocation8 + $0x1d0] sm:$0xff]
    %v373 = vld [vmem:[#allocation8 + $0x1d8] sm:$0xff]
    %v374 = vld [vmem:[#allocation8 + $0x1e0] sm:$0xff]
    %v375 = vld [vmem:[#allocation8 + $0x1e8] sm:$0xff]
    %v376 = vld [vmem:[#allocation8 + $0x1f0] sm:$0xff]
    %v377 = vld [vmem:[#allocation8 + $0x1f8] sm:$0xff]
    %378 = vmatpush.msra.mxu0 %v344
    %379 = vmatpush.msra.mxu0 %v342
    %380 = vmatpush.msra.mxu0 %v340
    %381 = vmatpush.msra.mxu0 %v338
    %382 = vmatpush.msra.mxu0 %v336
    %383 = vmatpush.msra.mxu0 %v334
    %384 = vmatpush.msra.mxu0 %v332
    %385 = vmatpush.msra.mxu0 %v330
    %386 = vmatpush.msra.mxu0 %v328
    %387 = vmatpush.msra.mxu0 %v326
    %388 = vmatpush.msra.mxu0 %v324
    %389 = vmatpush.msra.mxu0 %v322
    %390 = vmatpush.msra.mxu0 %v320
    %391 = vmatpush.msra.mxu0 %v318
    %392 = vmatpush.msra.mxu0 %v316
    %393 = vmatpush.msra.mxu0 %v314
    %394 = vmatmul.f32.gmra.mxu0 %v312
    %v395 = vpop.f32.mrf.mxu0
    %v396 = vadd.f32 0.0, %v395
    %397 = vdwg.mxu0
    %398 = vmatpush.msra.mxu0 %v376
    %399 = vmatpush.msra.mxu0 %v374
    %400 = vmatpush.msra.mxu0 %v372
    %401 = vmatpush.msra.mxu0 %v370
    %402 = vmatpush.msra.mxu0 %v368
    %403 = vmatpush.msra.mxu0 %v366
    %404 = vmatpush.msra.mxu0 %v364
    %405 = vmatpush.msra.mxu0 %v362
    %406 = vmatpush.msra.mxu0 %v360
    %407 = vmatpush.msra.mxu0 %v358
    %408 = vmatpush.msra.mxu0 %v356
    %409 = vmatpush.msra.mxu0 %v354
    %410 = vmatpush.msra.mxu0 %v352
    %411 = vmatpush.msra.mxu0 %v350
    %412 = vmatpush.msra.mxu0 %v348
    %413 = vmatpush.msra.mxu0 %v346
    %414 = vmatmul.f32.gmra.mxu0 %v313
    %v415 = vpop.f32.mrf.mxu0
    %v416 = vadd.f32 %v396, %v415
    %417 = vdwg.mxu0
    %418 = vmatpush.msra.mxu0 %v345
    %419 = vmatpush.msra.mxu0 %v343
    %420 = vmatpush.msra.mxu0 %v341
    %421 = vmatpush.msra.mxu0 %v339
    %422 = vmatpush.msra.mxu0 %v337
    %423 = vmatpush.msra.mxu0 %v335
    %424 = vmatpush.msra.mxu0 %v333
    %425 = vmatpush.msra.mxu0 %v331
    %426 = vmatpush.msra.mxu0 %v329
    %427 = vmatpush.msra.mxu0 %v327
    %428 = vmatpush.msra.mxu0 %v325
    %429 = vmatpush.msra.mxu0 %v323
    %430 = vmatpush.msra.mxu0 %v321
    %431 = vmatpush.msra.mxu0 %v319
    %432 = vmatpush.msra.mxu0 %v317
    %433 = vmatpush.msra.mxu0 %v315
    %434 = vmatmul.f32.gmra.mxu0 %v312
    %v435 = vpop.f32.mrf.mxu0
    %v436 = vadd.f32 0.0, %v435
    %437 = vdwg.mxu0
    %438 = vmatpush.msra.mxu0 %v377
    %439 = vmatpush.msra.mxu0 %v375
    %440 = vmatpush.msra.mxu0 %v373
    %441 = vmatpush.msra.mxu0 %v371
    %442 = vmatpush.msra.mxu0 %v369
    %443 = vmatpush.msra.mxu0 %v367
    %444 = vmatpush.msra.mxu0 %v365
    %445 = vmatpush.msra.mxu0 %v363
    %446 = vmatpush.msra.mxu0 %v361
    %447 = vmatpush.msra.mxu0 %v359
    %448 = vmatpush.msra.mxu0 %v357
    %449 = vmatpush.msra.mxu0 %v355
    %450 = vmatpush.msra.mxu0 %v353
    %451 = vmatpush.msra.mxu0 %v351
    %452 = vmatpush.msra.mxu0 %v349
    %453 = vmatpush.msra.mxu0 %v347
    %454 = vmatmul.f32.gmra.mxu0 %v313
    %v455 = vpop.f32.mrf.mxu0
    %v456 = vadd.f32 %v436, %v455
    %457 = vdwg.mxu0
    %v460 = vrot.slane %v456, 7
    %v461 = vsel %vm152, %v416, %v460
    %v463 = vlaneseq
    %vm464 = vcmp.ge.s32.totalorder %v463, 0
    %vm465 = vcmp.lt.s32.totalorder %v463, 256
    %vm466 = vmand %vm464, %vm465
    %467 = vst.msk [vmem:[#allocation10] sm:$0x3] %vm466, %v461
    // Predicated region
    $region34: #{tpu_custom_call.1} parent=1 // pred_check
      _
    $region35: #{tpu_custom_call.1} parent=1 // pred_check_branch
      %469 = sbr.rel (0) target = $region37
    $region36: #{tpu_custom_call.1} parent=1 // pred_region
      %471 = vsyncadd [#allocation4], 0
      %s473 = sshll.u32 [#allocation10], 4
      %s474 = int_to_ptr.vmem [resolvable:$true] %s473
      %s475 = sshll.u32 %s4, 4
      %s476 = int_to_ptr.hbm [resolvable:$true] %s475
      %478 = dma.vmem_to_hbm [thread:$0]  %s474, 32, %s476, [#allocation4]
    $region37: #{tpu_custom_call.1} parent=1 // pred_fallthru
      _
    // Predicated region
    $region38: #{tpu_custom_call.1} parent=1 // pred_check
      _
    $region39: #{tpu_custom_call.1} parent=1 // pred_check_branch
      %480 = sbr.rel (0) target = $region41
    $region40: #{tpu_custom_call.1} parent=1 // pred_region
      %482 = dma.done [#allocation4], 32
    $region41: #{tpu_custom_call.1} parent=1 // pred_fallthru
      _
    %483 = vsyncpa [#allocation3], 1
    %484 = vsyncpa [#allocation6], 1
    %485 = vsyncpa [#allocation9], 1
    %486 = vsyncpa [#allocation4], 1

</llo_original>
